<compile_context>
chip_gen: v7x
topology: tpu7x:2x2x1
jax: 0.10.0
libtpu: 0.0.40
codegen_flags: <defaults>
</compile_context>

<pallas_src>
import functools

import jax
import jax.numpy as jnp
from jax.experimental import pallas as pl
from jax.experimental.pallas import tpu as pltpu

_LANES = 128
_SUBLANES = 8
# 4096 rows * 128 lanes * 4 B = 2 MiB per input per pipeline buffer.
# 2 inputs x 2 buffers x 2 MiB = 8 MiB => fits v5e's 16 MiB scoped default and
# v7x's 64 MiB physical VMEM with plenty of headroom.
_MAX_CHUNK_ROWS = 4096


def _ceil_to(x: int, m: int) -> int:
    return (x + m - 1) // m * m


def _bce_kernel(x_ref, t_ref, o_ref, acc_ref):
    """x_ref/t_ref: (1, chunk_rows, 128); o_ref: (1, 8, 128); acc_ref: (8, 128)."""
    c = pl.program_id(1)

    @pl.when(c == 0)
    def _():
        acc_ref[...] = jnp.zeros_like(acc_ref)

    x = x_ref[...].astype(jnp.float32)
    t = t_ref[...].astype(jnp.float32)

    # PyTorch BCELoss clamps each log term at -100 for numerical safety.
    log_x = jnp.maximum(jnp.log(x), -100.0)
    log_1mx = jnp.maximum(jnp.log(1.0 - x), -100.0)
    bce = -(t * log_x + (1.0 - t) * log_1mx)          # (1, rows, 128)

    rows = bce.shape[1]
    # Partial reduction: fold groups of 8 sublanes into the (8, 128) accumulator.
    # This is a sequence of whole-vreg VPU adds (layout-preserving reshape across
    # full (8,128) tiles); no XLU cross-lane work in the hot loop.
    acc_ref[...] += jnp.sum(bce.reshape(rows // _SUBLANES, _SUBLANES, _LANES), axis=0)

    @pl.when(c == pl.num_programs(1) - 1)
    def _():
        # Dump the per-lane/per-sublane partials; the tiny final reduce + 1/denom
        # scale happens once in the wrapper.
        o_ref[0] = acc_ref[...]


@functools.partial(jax.jit, static_argnames=())
def bceloss_pallas(input_scale: jax.Array, target_scale: jax.Array) -> jax.Array:
    """Returns scalar total_loss = sum_n mean(BCE(input[n], target[n]))."""
    assert input_scale.shape == target_scale.shape
    n = input_scale.shape[0]
    chw = 1
    for d in input_scale.shape[1:]:
        chw *= int(d)

    # Flatten to a lane-dense layout.
    x = input_scale.reshape(n, chw)
    t = target_scale.reshape(n, chw)

    rows_needed = pl.cdiv(chw, _LANES)
    chunk_rows = min(_ceil_to(rows_needed, _SUBLANES), _MAX_CHUNK_ROWS)
    padded_rows = _ceil_to(rows_needed, chunk_rows)
    num_chunks = padded_rows // chunk_rows
    padded_len = padded_rows * _LANES

    if padded_len != chw:
        pad = padded_len - chw
        # Neutral padding: x=1, t=1 -> per-element BCE contribution is exactly 0
        # (t*log(1) = 0 and (1-t)*clamp(log(0)) = 0 * -100 = 0).
        x = jnp.pad(x, ((0, 0), (0, pad)), constant_values=1)
        t = jnp.pad(t, ((0, 0), (0, pad)), constant_values=1)

    x = x.reshape(n, padded_rows, _LANES)
    t = t.reshape(n, padded_rows, _LANES)

    partial = pl.pallas_call(
        _bce_kernel,
        out_shape=jax.ShapeDtypeStruct((n, _SUBLANES, _LANES), jnp.float32),
        grid_spec=pltpu.PrefetchScalarGridSpec(
            num_scalar_prefetch=0,
            grid=(n, num_chunks),
            in_specs=[
                pl.BlockSpec((1, chunk_rows, _LANES), lambda i, c: (i, c, 0)),
                pl.BlockSpec((1, chunk_rows, _LANES), lambda i, c: (i, c, 0)),
            ],
            # Per-sample output block (resident across the chunk axis, written
            # once on the last chunk).
            out_specs=pl.BlockSpec((1, _SUBLANES, _LANES), lambda i, c: (i, 0, 0)),
            scratch_shapes=[pltpu.VMEM((_SUBLANES, _LANES), jnp.float32)],
        ),
        compiler_params=pltpu.CompilerParams(
            # Per-sample axis is independent (megacore-shardable on v7x);
            # chunk axis is the sequential reduction.
            dimension_semantics=("parallel", "arbitrary"),
            vmem_limit_bytes=32 * 1024 * 1024,
        ),
    )(x, t)

    # sum_n mean_n == (global sum of per-element BCE) / (C*H*W); padding adds 0.
    return jnp.sum(partial) * (1.0 / float(chw))


def bceloss_ref(input_scale: jax.Array, target_scale: jax.Array) -> jax.Array:
    x = input_scale.astype(jnp.float32)
    t = target_scale.astype(jnp.float32)
    log_x = jnp.maximum(jnp.log(x), -100.0)
    log_1mx = jnp.maximum(jnp.log(1.0 - x), -100.0)
    bce = -(t * log_x + (1.0 - t) * log_1mx)
    return jnp.sum(jnp.mean(bce, axis=tuple(range(1, bce.ndim))))


if __name__ == "__main__":
    key = jax.random.PRNGKey(0)
    k1, k2 = jax.random.split(key)

    N, C, H, W = 2, 4, 16, 16
    # Inputs must be probabilities in (0,1): sigmoid of a normal draw.
    input_scale = jax.nn.sigmoid(jax.random.normal(k1, (N, C, H, W), jnp.float32))
    # Targets: binary {0,1} maps (typical saliency ground truth).
    target_scale = (jax.random.uniform(k2, (N, C, H, W)) > 0.5).astype(jnp.float32)

    # f32 path: exact match to the PyTorch semantics.
    loss = jax.block_until_ready(bceloss_pallas(input_scale, target_scale))
    ref = bceloss_ref(input_scale, target_scale)
    assert jnp.allclose(loss, ref, rtol=1e-5, atol=1e-5), (loss, ref)

    # bf16 inputs: halves HBM traffic; math still runs in f32 inside the kernel.
    x_bf16 = input_scale.astype(jnp.bfloat16)
    t_bf16 = target_scale.astype(jnp.bfloat16)
    loss_bf16 = jax.block_until_ready(bceloss_pallas(x_bf16, t_bf16))
    ref_bf16 = bceloss_ref(x_bf16.astype(jnp.float32), t_bf16.astype(jnp.float32))
    assert jnp.allclose(loss_bf16, ref_bf16, rtol=1e-4, atol=1e-4), (loss_bf16, ref_bf16)

    print("KERNEL_OK")
</pallas_src>

<mosaic_0001>
module attributes {stable_mosaic.version = 11 : i64} {
  func.func @_bce_kernel(%arg0: i32, %arg1: i32, %arg2: memref<1x8x128xf32, #tpu.memory_space<vmem>>, %arg3: memref<1x8x128xf32, #tpu.memory_space<vmem>>, %arg4: memref<1x8x128xf32, #tpu.memory_space<vmem>>, %arg5: memref<8x128xf32, #tpu.memory_space<vmem>>) attributes {dimension_semantics = [#tpu.dimension_semantics<parallel>, #tpu.dimension_semantics<arbitrary>], iteration_bounds = array<i64: 2, 1>, scalar_prefetch = 0 : i64, scratch_operands = 1 : i64, tpu.core_type = #tpu.core_type<tc>, window_params = [{transform_indices = @transform_0, window_bounds = array<i64: 1, 8, 128>}, {transform_indices = @transform_1, window_bounds = array<i64: 1, 8, 128>}, {transform_indices = @transform_2, window_bounds = array<i64: 1, 8, 128>}]} {
    %c0_i32 = arith.constant 0 : i32
    %0 = arith.cmpi eq, %arg1, %c0_i32 : i32
    %1 = arith.extui %0 : i1 to i32
    %c0_i32_0 = arith.constant 0 : i32
    %2 = arith.cmpi ne, %1, %c0_i32_0 : i32
    scf.if %2 {
      %cst_17 = arith.constant 0.000000e+00 : f32
      %27 = vector.broadcast %cst_17 : f32 to vector<8x128xf32>
      %c0_18 = arith.constant 0 : index
      %c0_19 = arith.constant 0 : index
      %28 = vector.load %arg5[%c0_18, %c0_19] : memref<8x128xf32, #tpu.memory_space<vmem>>, vector<8x128xf32>
      tpu.vector_store %arg5[%c0_18, %c0_19], %27 {strides = array<i32>} : memref<8x128xf32, #tpu.memory_space<vmem>>, vector<8x128xf32>,
    } else {
    }
    %c0 = arith.constant 0 : index
    %c0_1 = arith.constant 0 : index
    %c0_2 = arith.constant 0 : index
    %3 = vector.load %arg2[%c0, %c0_1, %c0_2] : memref<1x8x128xf32, #tpu.memory_space<vmem>>, vector<1x8x128xf32>
    %c0_3 = arith.constant 0 : index
    %c0_4 = arith.constant 0 : index
    %c0_5 = arith.constant 0 : index
    %4 = vector.load %arg3[%c0_3, %c0_4, %c0_5] : memref<1x8x128xf32, #tpu.memory_space<vmem>>, vector<1x8x128xf32>
    %5 = math.log %3 : vector<1x8x128xf32>
    %cst = arith.constant -1.000000e+02 : f32
    %6 = vector.broadcast %cst : f32 to vector<1x8x128xf32>
    %7 = arith.maximumf %5, %6 : vector<1x8x128xf32>
    %cst_6 = arith.constant 1.000000e+00 : f32
    %8 = vector.broadcast %cst_6 : f32 to vector<1x8x128xf32>
    %9 = arith.subf %8, %3 : vector<1x8x128xf32>
    %10 = math.log %9 : vector<1x8x128xf32>
    %cst_7 = arith.constant -1.000000e+02 : f32
    %11 = vector.broadcast %cst_7 : f32 to vector<1x8x128xf32>
    %12 = arith.maximumf %10, %11 : vector<1x8x128xf32>
    %13 = arith.mulf %4, %7 : vector<1x8x128xf32>
    %cst_8 = arith.constant 1.000000e+00 : f32
    %14 = vector.broadcast %cst_8 : f32 to vector<1x8x128xf32>
    %15 = arith.subf %14, %4 : vector<1x8x128xf32>
    %16 = arith.mulf %15, %12 : vector<1x8x128xf32>
    %17 = arith.addf %13, %16 : vector<1x8x128xf32>
    %cst_9 = arith.constant 0.000000e+00 : f32
    %18 = vector.broadcast %cst_9 : f32 to vector<1x8x128xf32>
    %19 = arith.subf %18, %17 : vector<1x8x128xf32>
    %c0_10 = arith.constant 0 : index
    %c0_11 = arith.constant 0 : index
    %20 = vector.load %arg5[%c0_10, %c0_11] : memref<8x128xf32, #tpu.memory_space<vmem>>, vector<8x128xf32>
    %cst_12 = arith.constant dense<0.000000e+00> : vector<8x128xf32>
    %21 = vector.multi_reduction <add>, %19, %cst_12 [0] : vector<1x8x128xf32> to vector<8x128xf32>
    %22 = arith.addf %20, %21 : vector<8x128xf32>
    %c0_13 = arith.constant 0 : index
    %c0_14 = arith.constant 0 : index
    %23 = vector.load %arg5[%c0_13, %c0_14] : memref<8x128xf32, #tpu.memory_space<vmem>>, vector<8x128xf32>
    tpu.vector_store %arg5[%c0_13, %c0_14], %22 {strides = array<i32>} : memref<8x128xf32, #tpu.memory_space<vmem>>, vector<8x128xf32>,
    %c0_i32_15 = arith.constant 0 : i32
    %24 = arith.cmpi eq, %arg1, %c0_i32_15 : i32
    %25 = arith.extui %24 : i1 to i32
    %c0_i32_16 = arith.constant 0 : i32
    %26 = arith.cmpi ne, %25, %c0_i32_16 : i32
    scf.if %26 {
      %c0_17 = arith.constant 0 : index
      %c0_18 = arith.constant 0 : index
      %27 = vector.load %arg5[%c0_17, %c0_18] : memref<8x128xf32, #tpu.memory_space<vmem>>, vector<8x128xf32>
      %c0_19 = arith.constant 0 : index
      %c0_20 = arith.constant 0 : index
      %c0_21 = arith.constant 0 : index
      %28 = vector.load %arg4[%c0_19, %c0_20, %c0_21] : memref<1x8x128xf32, #tpu.memory_space<vmem>>, vector<1x8x128xf32>
      %29 = vector.shape_cast %28 : vector<1x8x128xf32> to vector<8x128xf32>
      %30 = vector.shape_cast %27 : vector<8x128xf32> to vector<1x8x128xf32>
      tpu.vector_store %arg4[%c0_19, %c0_20, %c0_21], %30 {strides = array<i32>} : memref<1x8x128xf32, #tpu.memory_space<vmem>>, vector<1x8x128xf32>,
    } else {
    }
    return
  }
  func.func @transform_0(%arg0: i32, %arg1: i32) -> (i32, i32, i32) {
    %c0_i32 = arith.constant 0 : i32
    %c0_i32_0 = arith.constant 0 : i32
    return %arg0, %arg1, %c0_i32 : i32, i32, i32
  }
  func.func @transform_1(%arg0: i32, %arg1: i32) -> (i32, i32, i32) {
    %c0_i32 = arith.constant 0 : i32
    %c0_i32_0 = arith.constant 0 : i32
    return %arg0, %arg1, %c0_i32 : i32, i32, i32
  }
  func.func @transform_2(%arg0: i32, %arg1: i32) -> (i32, i32, i32) {
    %c0_i32 = arith.constant 0 : i32
    %c0_i32_0 = arith.constant 0 : i32
    %c0_i32_1 = arith.constant 0 : i32
    return %arg0, %c0_i32, %c0_i32_0 : i32, i32, i32
  }
}

</mosaic_0001>

<llo_original>
// kernel: bceloss_pallas.1
$region0: #{bceloss_pallas.1}
  #allocation0 [shape = 'u32[]', space=smem, size = 0x4, offset = 0x4, fixed_abs, tag = 'smem constant byte address 0x4 - core index']
  #allocation1 [shape = 'u32[144,128]{1,0:T(1,128)}', space=vmem, size = 0x12000, scoped, tag = 'internal scratch']
  #allocation2 [shape = 'f32[8,128]{1,0:T(8,128)}', space=vmem, size = 0x1000, scoped, tag = 'scratch operand']
  %s0 = inlined_call_operand.vmem [shape: f32[2,8,128], index: 0, kind: input, shape index: {}]
  %s1 = inlined_call_operand.vmem [shape: f32[2,8,128], index: 1, kind: input, shape index: {}]
  %s2 = inlined_call_operand.vmem [shape: f32[2,8,128], index: 2, kind: output, shape index: {}]
  %s3 = sld [smem:[#allocation0]]
  $region49: #{bceloss_pallas.1} parent=0
    _
  %s5 = ssub.s32 1, %s3
  %s6 = scalar_select 0, %s5, %s3
  loop: start=0, step=1, limit=4
  $region2: #{bceloss_pallas.1} parent=0 // loop_pre_header
    _
  $region3: #{bceloss_pallas.1} parent=0 // loop_header
    %s8 = sphi 0, %s12
    %p9 = scmp.ge.s32.totalorder %s8, 4
    %s15 = sphi 0, %s27
    %s16 = sphi 0, %s23
    %s17 = sphi 0, %s15
    %s18 = sphi 0, %s16
    %s19 = sphi 0, %s17
    %s20 = sphi 0, %s18
    %s32 = sphi 0, %s34
    %s35 = sphi 0, %s32
    %s36 = sphi 0, %s35
    %s52 = sphi 0, %s36
    %s60 = sphi 0, %s62
    %s63 = sphi 0, %s60
    %s64 = sphi 0, %s63
    %s80 = sphi 0, %s64
    %s86 = sphi 0, %s88
    %s89 = sphi 0, %s86
    %s90 = sphi 0, %s89
    %s106 = sphi 0, %s90
  $region4: #{bceloss_pallas.1} parent=0 // loop_header_branch
    %11 = sbr.rel (%p9) target = $region8
  $region5: #{bceloss_pallas.1} parent=0 // loop_body
    %s13 = ssub.s32 %s8, 1
    %s14 = ssub.s32 %s8, 2
    %s21 = sadd.s32 1, %s16
    %p22 = scmp.ge.s32.totalorder %s21, 1
    %s23 = scalar_select %p22, 0, %s21
    %s24 = sadd.s32 1, %s15
    %s25 = scalar_select %p22, %s24, %s15
    %p26 = scmp.ge.s32.totalorder %s25, 2
    %s27 = scalar_select %p26, 0, %s25
    %s28 = ssub.s32 %s15, %s27
    %s29 = ssub.s32 %s16, %s23
    %s30 = sor.u32 %s28, %s29
    %p31 = scmp.eq.s32.totalorder %s30, 0
    %s33 = sadd.s32 %s32, 1
    %s34 = scalar_select %p31, %s32, %s33
    %p37 = pneg %p31
    %p38 = scmp.eq.s32.totalorder %s8, 1
    %p39 = por %p37, %p38
    %p40 = scmp.ne.s32.totalorder %s32, %s35
    %p41 = scmp.eq.s32.totalorder %s8, 0
    %p42 = por %p40, %p41
    %p43 = scmp.ne.s32.totalorder %s32, %s35
    %p44 = scmp.eq.s32.totalorder %s13, 1
    %p45 = por %p43, %p44
    %p46 = scmp.ne.s32.totalorder %s35, %s36
    %p47 = scmp.eq.s32.totalorder %s13, 0
    %p48 = por %p46, %p47
    %p49 = scmp.ne.s32.totalorder %s35, %s36
    %p50 = scmp.eq.s32.totalorder %s14, 1
    %p51 = por %p49, %p50
    %p53 = scmp.ne.s32.totalorder %s36, %s52
    %p54 = scmp.eq.s32.totalorder %s14, 0
    %p55 = por %p53, %p54
    %s56 = ssub.s32 %s15, %s27
    %s57 = ssub.s32 %s16, %s23
    %s58 = sor.u32 %s56, %s57
    %p59 = scmp.eq.s32.totalorder %s58, 0
    %s61 = sadd.s32 %s60, 1
    %s62 = scalar_select %p59, %s60, %s61
    %p65 = pneg %p59
    %p66 = scmp.eq.s32.totalorder %s8, 1
    %p67 = por %p65, %p66
    %p68 = scmp.ne.s32.totalorder %s60, %s63
    %p69 = scmp.eq.s32.totalorder %s8, 0
    %p70 = por %p68, %p69
    %p71 = scmp.ne.s32.totalorder %s60, %s63
    %p72 = scmp.eq.s32.totalorder %s13, 1
    %p73 = por %p71, %p72
    %p74 = scmp.ne.s32.totalorder %s63, %s64
    %p75 = scmp.eq.s32.totalorder %s13, 0
    %p76 = por %p74, %p75
    %p77 = scmp.ne.s32.totalorder %s63, %s64
    %p78 = scmp.eq.s32.totalorder %s14, 1
    %p79 = por %p77, %p78
    %p81 = scmp.ne.s32.totalorder %s64, %s80
    %p82 = scmp.eq.s32.totalorder %s14, 0
    %p83 = por %p81, %p82
    %s84 = ssub.s32 %s15, %s27
    %p85 = scmp.eq.s32.totalorder %s84, 0
    %s87 = sadd.s32 %s86, 1
    %s88 = scalar_select %p85, %s86, %s87
    %p91 = pneg %p85
    %p92 = scmp.eq.s32.totalorder %s8, 1
    %p93 = por %p91, %p92
    %p94 = scmp.ne.s32.totalorder %s86, %s89
    %p95 = scmp.eq.s32.totalorder %s8, 0
    %p96 = por %p94, %p95
    %p97 = scmp.ne.s32.totalorder %s86, %s89
    %p98 = scmp.eq.s32.totalorder %s13, 1
    %p99 = por %p97, %p98
    %p100 = scmp.ne.s32.totalorder %s89, %s90
    %p101 = scmp.eq.s32.totalorder %s13, 0
    %p102 = por %p100, %p101
    %p103 = scmp.ne.s32.totalorder %s89, %s90
    %p104 = scmp.eq.s32.totalorder %s14, 1
    %p105 = por %p103, %p104
    %p107 = scmp.ne.s32.totalorder %s90, %s106
    %p108 = scmp.eq.s32.totalorder %s14, 0
    %p109 = por %p107, %p108
    %p110 = scmp.le.s32.totalorder 1, %s8
    %p111 = scmp.lt.s32.totalorder %s8, 3
    %p112 = pnand %p110, %p111
    %p113 = pneg %p112
    // Predicated region
    $region9: #{bceloss_pallas.1} parent=5 // pred_check
      _
    $region10: #{bceloss_pallas.1} parent=5 // pred_check_branch
      %115 = sbr.rel (%p112) target = $region12
    $region11: #{bceloss_pallas.1} parent=5 // pred_region
      %s116 = ssub.s32 %s8, 1
    $region12: #{bceloss_pallas.1} parent=5 // pred_fallthru
      _
    %p117 = scmp.lt.s32.totalorder %s8, 2
    // Predicated region
    $region13: #{bceloss_pallas.1} parent=5 // pred_check
      %p118 = pneg %p117
    $region14: #{bceloss_pallas.1} parent=5 // pred_check_branch
      %120 = sbr.rel (%p118) target = $region16
    $region15: #{bceloss_pallas.1} parent=5 // pred_region
      // Predicated region
      $region17: #{bceloss_pallas.1} parent=15 // pred_check
        %p121 = pneg %p42
      $region18: #{bceloss_pallas.1} parent=15 // pred_check_branch
        %123 = sbr.rel (%p121) target = $region20
      $region19: #{bceloss_pallas.1} parent=15 // pred_region
        %p124 = scmp.lt.s32.totalorder %s15, 1
        %s125 = scalar_select %p124, %s15, 1
        %p126 = scmp.lt.s32.totalorder %s16, 0
        %s127 = scalar_select %p126, %s16, 0
        %s128 = sadd.s32 %s127, %s125
        %s129 = smul.addr %s128, 8
        %s130 = scalar_lea.vmem %s0, %s129
      $region20: #{bceloss_pallas.1} parent=15 // pred_fallthru
        _
      // Predicated region
      $region21: #{bceloss_pallas.1} parent=15 // pred_check
        %p131 = pneg %p70
      $region22: #{bceloss_pallas.1} parent=15 // pred_check_branch
        %133 = sbr.rel (%p131) target = $region24
      $region23: #{bceloss_pallas.1} parent=15 // pred_region
        %p134 = scmp.lt.s32.totalorder %s15, 1
        %s135 = scalar_select %p134, %s15, 1
        %p136 = scmp.lt.s32.totalorder %s16, 0
        %s137 = scalar_select %p136, %s16, 0
        %s138 = sadd.s32 %s137, %s135
        %s139 = smul.addr %s138, 8
        %s140 = scalar_lea.vmem %s1, %s139
      $region24: #{bceloss_pallas.1} parent=15 // pred_fallthru
        _
    $region16: #{bceloss_pallas.1} parent=5 // pred_fallthru
      _
    %p141 = scmp.le.s32.totalorder 1, %s8
    %p142 = scmp.lt.s32.totalorder %s8, 3
    %p143 = pnand %p141, %p142
    %p144 = pneg %p143
    // Predicated region
    $region25: #{bceloss_pallas.1} parent=5 // pred_check
      _
    $region26: #{bceloss_pallas.1} parent=5 // pred_check_branch
      %146 = sbr.rel (%p143) target = $region28
    $region27: #{bceloss_pallas.1} parent=5 // pred_region
      %s147 = ssub.s32 %s8, 1
      %p148 = scmp.lt.s32.totalorder %s17, 1
      %s149 = scalar_select %p148, %s17, 1
      %p150 = scmp.lt.s32.totalorder %s18, 0
      %s151 = scalar_select %p150, %s18, 0
      %s152 = sadd.s32 %s151, %s149
      %s153 = smul.addr %s152, 8
      %s154 = scalar_lea.vmem %s0, %s153
      %p155 = pneg %p48
      %p156 = pneg %p45
      %p157 = scmp.lt.s32.totalorder %s17, 1
      %s158 = scalar_select %p157, %s17, 1
      %p159 = scmp.lt.s32.totalorder %s18, 0
      %s160 = scalar_select %p159, %s18, 0
      %s161 = sadd.s32 %s160, %s158
      %s162 = smul.addr %s161, 8
      %s163 = scalar_lea.vmem %s1, %s162
      %p164 = pneg %p76
      %p165 = pneg %p73
      %p166 = pneg %p102
      %p167 = pneg %p99
      %p168 = scmp.lt.s32.totalorder %s17, 1
      %s169 = scalar_select %p168, %s17, 1
      %s170 = smul.addr %s169, 8
      %s171 = scalar_lea.vmem %s2, %s170
      %p172 = scmp.lt.s32.totalorder %s17, 1
      %s173 = scalar_select %p172, %s17, 1
      %p174 = scmp.lt.s32.totalorder %s18, 0
      %s175 = scalar_select %p174, %s18, 0
      %s176 = sadd.s32 %s175, %s173
      %s177 = smul.addr %s176, 8
      %s178 = scalar_lea.vmem %s0, %s177
      %p179 = scmp.lt.s32.totalorder %s17, 1
      %s180 = scalar_select %p179, %s17, 1
      %p181 = scmp.lt.s32.totalorder %s18, 0
      %s182 = scalar_select %p181, %s18, 0
      %s183 = sadd.s32 %s182, %s180
      %s184 = smul.addr %s183, 8
      %s185 = scalar_lea.vmem %s1, %s184
      %p186 = scmp.lt.s32.totalorder %s17, 1
      %s187 = scalar_select %p186, %s17, 1
      %s188 = smul.addr %s187, 8
      %s189 = scalar_lea.vmem %s2, %s188
      %p190 = scmp.eq.s32.totalorder %s18, 0
      // Predicated region
      $region29: #{bceloss_pallas.1} parent=27 // pred_check
        %p191 = pneg %p190
      $region30: #{bceloss_pallas.1} parent=27 // pred_check_branch
        %193 = sbr.rel (%p191) target = $region32
      $region31: #{bceloss_pallas.1} parent=27 // pred_region
        %194 = vst [vmem:[#allocation2] sm:$0xff] 0.0
      $region32: #{bceloss_pallas.1} parent=27 // pred_fallthru
        _
      %v195 = vld [vmem:[%s178] sm:$0xff]
      %v196 = vld [vmem:[%s185] sm:$0xff]
      %v197 = vlog2.pop %v195
      %v198 = vmul.f32 %v197, 0.6931472
      %v199 = vmax.f32 %v198, -100.0
      %v200 = vsub.f32 1.0, %v195
      %v201 = vlog2.pop %v200
      %v202 = vmul.f32 %v201, 0.6931472
      %v203 = vmax.f32 %v202, -100.0
      %v204 = vmul.f32 %v196, %v199
      %v205 = vsub.f32 1.0, %v196
      %v206 = vmul.f32 %v205, %v203
      %v207 = vadd.f32 %v204, %v206
      %v208 = vsub.f32 0.0, %v207
      %v209 = vld [vmem:[#allocation2] sm:$0xff]
      %v210 = vadd.f32 %v208, 0.0
      %v211 = vadd.f32 %v209, %v210
      %212 = vst [vmem:[#allocation2] sm:$0xff] %v211
      // Predicated region
      $region33: #{bceloss_pallas.1} parent=27 // pred_check
        %p213 = pneg %p190
      $region34: #{bceloss_pallas.1} parent=27 // pred_check_branch
        %215 = sbr.rel (%p213) target = $region36
      $region35: #{bceloss_pallas.1} parent=27 // pred_region
        %v216 = vld [vmem:[#allocation2] sm:$0xff]
        %217 = vst [vmem:[%s189] sm:$0xff] %v216
      $region36: #{bceloss_pallas.1} parent=27 // pred_fallthru
        _
      %p218 = scmp.lt.s32.totalorder %s17, 1
      %s219 = scalar_select %p218, %s17, 1
      %s220 = smul.addr %s219, 8
      %s221 = scalar_lea.vmem %s2, %s220
      // Predicated region
      $region37: #{bceloss_pallas.1} parent=27 // pred_check
        %p222 = pneg %p99
      $region38: #{bceloss_pallas.1} parent=27 // pred_check_branch
        %224 = sbr.rel (%p222) target = $region40
      $region39: #{bceloss_pallas.1} parent=27 // pred_region
        _
      $region40: #{bceloss_pallas.1} parent=27 // pred_fallthru
        _
    $region28: #{bceloss_pallas.1} parent=5 // pred_fallthru
      _
    %p225 = scmp.le.s32.totalorder 2, %s8
    // Predicated region
    $region41: #{bceloss_pallas.1} parent=5 // pred_check
      %p226 = pneg %p225
    $region42: #{bceloss_pallas.1} parent=5 // pred_check_branch
      %228 = sbr.rel (%p226) target = $region44
    $region43: #{bceloss_pallas.1} parent=5 // pred_region
      %s229 = ssub.s32 %s8, 2
      // Predicated region
      $region45: #{bceloss_pallas.1} parent=43 // pred_check
        %p230 = pneg %p105
      $region46: #{bceloss_pallas.1} parent=43 // pred_check_branch
        %232 = sbr.rel (%p230) target = $region48
      $region47: #{bceloss_pallas.1} parent=43 // pred_region
        %p233 = scmp.lt.s32.totalorder %s19, 1
        %s234 = scalar_select %p233, %s19, 1
        %s235 = smul.addr %s234, 8
        %s236 = scalar_lea.vmem %s2, %s235
      $region48: #{bceloss_pallas.1} parent=43 // pred_fallthru
        _
    $region44: #{bceloss_pallas.1} parent=5 // pred_fallthru
      _
  $region6: #{bceloss_pallas.1} parent=0 // loop_footer
    %s12 = sadd.s32 1, %s8
  $region7: #{bceloss_pallas.1} parent=0 // loop_footer_branch
    %7 = sbr.rel target = $region3
  $region8: #{bceloss_pallas.1} parent=0 // loop_exit
    _

</llo_original>
